<compile_context>
chip_gen: v6e
topology: v6e:2x2x1
jax: 0.10.0
libtpu: 0.0.40
codegen_flags: <defaults>
</compile_context>

<pallas_src>
import functools

import jax
import jax.numpy as jnp
from jax import lax
from jax.experimental import pallas as pl
from jax.experimental.pallas import tpu as pltpu


def _encoding_kernel(x_ref, cs_ref, c_ref, scale_ref, bias_ref, e_ref, *,
                     tile_n, n_rem, last_s, last_nt, mxu_dtype):
    """Grid = (n_split s, batch b, n-tile nt).  nt is the reduction axis."""
    s = pl.program_id(0)
    nt = pl.program_id(2)

    @pl.when(nt == 0)
    def _init():
        e_ref[...] = jnp.zeros_like(e_ref)

    if n_rem:
        # Exactly one tile (the globally last one) runs past N.  Zero just its padded
        # tail columns in the VMEM block, once — O(D * pad) on a single tile instead
        # of an O(D * tn) select on every tile.
        is_ragged = jnp.logical_and(s == last_s, nt == last_nt)

        @pl.when(is_ragged)
        def _zero_tail():
            x_ref[0, :, n_rem:] = jnp.zeros(
                (x_ref.shape[1], tile_n - n_rem), x_ref.dtype)

    x = x_ref[0]                                              # (D, tn), input dtype
    xf = x.astype(jnp.float32)
    xm = x if x.dtype == mxu_dtype else x.astype(mxu_dtype)

    # logits^T (K, tn):  scale_k * (|x_n|^2 - 2 c_k.x_n + |c_k|^2)
    #   = (c_scaled @ x)[k,n] + scale_k * |x_n|^2 + bias_k      (hoisted terms)
    xc = jnp.dot(cs_ref[...], xm, preferred_element_type=jnp.float32)   # (K, tn) MXU
    x2 = jnp.sum(xf * xf, axis=0, keepdims=True)                        # (1, tn)
    logits = xc + scale_ref[...] * x2 + bias_ref[...]                   # (K, tn)

    # Numerically-stable softmax over K (sublane axis) — lane-dense in tn.
    m = jnp.max(logits, axis=0, keepdims=True)
    p = jnp.exp(logits - m)
    a = p * (1.0 / jnp.sum(p, axis=0, keepdims=True))                   # (K, tn)

    if n_rem:
        # Only the assignment matrix needs per-tile masking: O(K*tn) + O(tn).
        lane = lax.broadcasted_iota(jnp.int32, (1, tile_n), 1)
        valid = jnp.logical_or(jnp.logical_not(is_ragged), lane < n_rem)
        a = jnp.where(valid, a, 0.0)

    # E contribution:  A^T X  -  (sum_n A)_k * C.  Contract over N directly.
    am = a if a.dtype == mxu_dtype else a.astype(mxu_dtype)
    axk = lax.dot_general(am, xm,
                          dimension_numbers=(((1,), (1,)), ((), ())),
                          preferred_element_type=jnp.float32)           # (K, D) MXU
    asum = jnp.sum(a, axis=1, keepdims=True)                            # (K, 1)
    e_ref[0, 0] += axk - asum * c_ref[...]


@functools.partial(jax.jit, static_argnames=("tile_n", "n_splits", "mxu_dtype"))
def encoding_forward(x_nchw, codewords, scale, *, tile_n=None, n_splits=1,
                     mxu_dtype=None):
    """x_nchw: (B, D, H, W) (or (D, H, W)); codewords: (K, D); scale: (K,) -> E: (B, K, D)."""
    unpacked = False
    if x_nchw.ndim == 3:
        unpacked = True
        x_nchw = x_nchw[None]

    B, D, H, W = x_nchw.shape
    K = codewords.shape[0]
    N = H * W
    out_dtype = x_nchw.dtype
    itemsize = jnp.dtype(x_nchw.dtype).itemsize

    # No HBM transpose: channels-first (B, D, N) is a free reshape; N lands on lanes.
    x = x_nchw.reshape(B, D, N)

    # MXU dtype follows the activation dtype (bf16 in -> bf16 MXU, f32 accumulate).
    if mxu_dtype is None:
        md = jnp.bfloat16 if x.dtype == jnp.bfloat16 else jnp.float32
    else:
        md = mxu_dtype

    # Loop-invariant codeword terms (computed once, outside the grid).
    cw32 = codewords.astype(jnp.float32)
    sc32 = scale.astype(jnp.float32)
    cs = ((-2.0 * sc32)[:, None] * cw32).astype(md)                  # (K, D)
    bias = (sc32 * jnp.sum(cw32 * cw32, axis=1)).reshape(K, 1)       # (K, 1)
    scale_col = sc32.reshape(K, 1)                                   # (K, 1)

    # ---- generation-aware VMEM budget (~25% headroom: v7x ~48 MiB, v5e/v6e ~96 MiB).
    try:
        info = pltpu.get_tpu_info()
        vmem_cap = int(getattr(info, "vmem_capacity_bytes", 64 << 20))
    except Exception:
        vmem_cap = 64 << 20        # conservative: v7x per-TC physical size
    vmem_budget = (vmem_cap * 3) // 4

    kd_bytes = K * D * 4
    # Conservative per-column VMEM footprint: up to 3 pipelined x buffers plus f32
    # temporaries for the in-kernel math (xf, logits/softmax, ...).
    per_col = 3 * D * itemsize + 3 * D * 4 + 8 * K * 4 + 32
    fixed = 16 * kd_bytes + (4 << 20)
    tn_vmem_cap = max(128, (vmem_budget - fixed) // per_col)

    # ---- N tiling: HBM-bound kernel, so aim for 2-8 MiB x tiles (>=4 KiB contiguous
    # per D-row DMA chunk, per-step overhead amortized), lane-aligned.
    if tile_n is None:
        target_bytes = max(2 << 20, min(8 << 20, vmem_budget // 6))
        tn = max(1024, target_bytes // (D * itemsize))
    else:
        tn = int(tile_n)
    tn = int(min(tn, tn_vmem_cap, N))
    if tn < N:
        tn = max(128, (tn // 128) * 128)
        # Prefer an evenly-dividing (multiple of 128) tile so the ragged-tail path is
        # skipped entirely, as long as it doesn't shrink the tile by more than 2x.
        if N % tn != 0 and N % 128 == 0:
            for cand in range(tn, tn // 2 - 1, -128):
                if cand >= 128 and N % cand == 0:
                    tn = cand
                    break

    num_tiles = pl.cdiv(N, tn)
    n_rem = N % tn                      # 0 => no ragged tile, no masking work at all

    # n_splits: only useful on dual-TC chips (v7x) when B alone can't feed both cores
    # (e.g. B == 1).  Default 1 (pure overhead on single-TC v5e/v6e); silently ignored
    # when it doesn't divide the tile count.
    ns = max(1, int(n_splits))
    if ns > 1 and num_tiles % ns != 0:
        ns = 1
    tiles_per_split = num_tiles // ns

    # Pipelining depth for the x input: 3-deep only when there are enough tiles for it
    # to matter (the per-tile compute is tiny; extra buffer hides DMA issue latency).
    n_buffers = 3 if num_tiles >= 3 else 2

    # Honest VMEM limit, capped by the generation-aware budget (never the full 64 MiB
    # physical VMEM of a v7x TensorCore).
    est = per_col * tn + fixed
    vmem_limit = int(min(vmem_budget, max(est, 16 << 20)))

    kernel = functools.partial(
        _encoding_kernel,
        tile_n=tn, n_rem=n_rem,
        last_s=ns - 1, last_nt=tiles_per_split - 1,
        mxu_dtype=md)

    x_index_map = lambda s, b, n, _tps=tiles_per_split: (b, 0, s * _tps + n)
    x_spec = None
    if n_buffers != 2 and hasattr(pl, "Buffered"):
        try:
            x_spec = pl.BlockSpec((1, D, tn), x_index_map,
                                  pipeline_mode=pl.Buffered(n_buffers))
        except TypeError:   # older API without pipeline_mode: fall back to default
            x_spec = None
    if x_spec is None:
        x_spec = pl.BlockSpec((1, D, tn), x_index_map)

    # Advisory cost: mem-bound custom call (single read of X dominates).
    cost = pl.CostEstimate(
        flops=int(4 * B * N * K * D + 4 * B * N * D + 8 * B * N * K),
        transcendentals=int(B * N * K),
        bytes_accessed=int(B * D * N * itemsize + ns * B * K * D * 4
                           + 3 * K * D * 4 + 2 * K * 4),
    )

    grid = (ns, B, tiles_per_split)
    e_parts = pl.pallas_call(
        kernel,
        out_shape=jax.ShapeDtypeStruct((ns, B, K, D), jnp.float32),
        grid_spec=pltpu.PrefetchScalarGridSpec(
            num_scalar_prefetch=0,
            grid=grid,
            in_specs=[
                x_spec,                                         # x tile (1, D, tn)
                pl.BlockSpec((K, D), lambda s, b, n: (0, 0)),   # c_scaled
                pl.BlockSpec((K, D), lambda s, b, n: (0, 0)),   # codewords
                pl.BlockSpec((K, 1), lambda s, b, n: (0, 0)),   # scale
                pl.BlockSpec((K, 1), lambda s, b, n: (0, 0)),   # bias
            ],
            out_specs=pl.BlockSpec((1, 1, K, D), lambda s, b, n: (s, b, 0, 0)),
        ),
        compiler_params=pltpu.CompilerParams(
            dimension_semantics=("parallel", "parallel", "arbitrary"),
            vmem_limit_bytes=vmem_limit,
        ),
        cost_estimate=cost,
    )(x, cs, cw32, scale_col, bias)

    e = e_parts[0] if ns == 1 else jnp.sum(e_parts, axis=0)
    e = e.astype(out_dtype)
    if unpacked:
        e = e[0]
    return e


def _reference_forward(x_nchw, codewords, scale):
    """Pure-JAX reference matching the PyTorch forward exactly."""
    B, D, H, W = x_nchw.shape
    N = H * W
    x = jnp.transpose(x_nchw.reshape(B, D, N), (0, 2, 1))            # (B, N, D)
    r = x[:, :, None, :] - codewords[None, None, :, :]               # (B, N, K, D)
    a = jnp.sum(r * r, axis=3) * scale[None, None, :]                # (B, N, K)
    a = jax.nn.softmax(a, axis=-1)
    e = jnp.sum(a[..., None] * r, axis=1)                            # (B, K, D)
    return e


if __name__ == "__main__":
    # Small, deterministic setup consistent with the module:
    #   D = feature channels, K = number of codewords.
    B, D, K, H, W = 2, 32, 8, 16, 16

    key = jax.random.PRNGKey(0)
    k_x, k_cw, k_sc = jax.random.split(key, 3)

    # reset_params(): uniform(-std, std) with std1 = 1/sqrt(K*D), std2 = 1/sqrt(K)
    std1 = 1.0 / (K * D) ** 0.5
    std2 = 1.0 / K ** 0.5
    codewords = jax.random.uniform(k_cw, (K, D), jnp.float32, -std1, std1)
    scale = jax.random.uniform(k_sc, (K,), jnp.float32, -std2, std2)

    x = jax.random.normal(k_x, (B, D, H, W), jnp.float32)

    # 1) Main path: auto-sized tile (N=256 -> single tile), f32.
    e = encoding_forward(x, codewords, scale)
    jax.block_until_ready(e)
    e_ref = _reference_forward(x, codewords, scale)
    assert e.shape == (B, K, D)
    assert jnp.allclose(e, e_ref, rtol=1e-4, atol=1e-4), "mismatch vs reference"

    # 2) Non-divisible spatial size (cheap ragged-tail path) + 2-way N split
    #    (dual-TC option; ns honored because it divides the tile count).
    x_odd = jax.random.normal(jax.random.PRNGKey(1), (B, D, 14, 14), jnp.float32)
    e_odd = encoding_forward(x_odd, codewords, scale, tile_n=128, n_splits=2)
    jax.block_until_ready(e_odd)
    e_odd_ref = _reference_forward(x_odd, codewords, scale)
    assert jnp.allclose(e_odd, e_odd_ref, rtol=1e-4, atol=1e-4), "masked/split mismatch"

    # 3) Multi-tile path with the evenly-dividing-tile search (N=2304, tile 512 -> 384)
    #    and 3-deep input pipelining, larger D, batch of 1 (3-D "unpacked" input).
    D2, K2 = 64, 8
    cw2 = jax.random.uniform(jax.random.PRNGKey(2), (K2, D2), jnp.float32,
                             -1.0 / (K2 * D2) ** 0.5, 1.0 / (K2 * D2) ** 0.5)
    sc2 = jax.random.uniform(jax.random.PRNGKey(3), (K2,), jnp.float32,
                             -1.0 / K2 ** 0.5, 1.0 / K2 ** 0.5)
    x_med = jax.random.normal(jax.random.PRNGKey(4), (D2, 48, 48), jnp.float32)
    e_med = encoding_forward(x_med, cw2, sc2, tile_n=512)
    jax.block_until_ready(e_med)
    e_med_ref = _reference_forward(x_med[None], cw2, sc2)[0]
    assert e_med.shape == (K2, D2)
    assert jnp.allclose(e_med, e_med_ref, rtol=1e-4, atol=1e-4), "multi-tile mismatch"

    # 4) bf16 activations end-to-end (halves the dominant X read; bf16 MXU, f32 acc).
    x_bf16 = x.astype(jnp.bfloat16)
    e_bf16 = encoding_forward(x_bf16, codewords, scale)
    jax.block_until_ready(e_bf16)
    e_bf16_ref = _reference_forward(x_bf16.astype(jnp.float32), codewords, scale)
    assert e_bf16.dtype == jnp.bfloat16
    assert jnp.allclose(e_bf16.astype(jnp.float32), e_bf16_ref,
                        rtol=1e-1, atol=1e-1), "bf16 path mismatch"

    print("KERNEL_OK")
</pallas_src>

<mosaic_0001>
module attributes {stable_mosaic.version = 11 : i64} {
  func.func @_encoding_kernel(%arg0: i32, %arg1: i32, %arg2: i32, %arg3: memref<1x32x256xf32, #tpu.memory_space<vmem>>, %arg4: memref<8x32xf32, #tpu.memory_space<vmem>>, %arg5: memref<8x32xf32, #tpu.memory_space<vmem>>, %arg6: memref<8x1xf32, #tpu.memory_space<vmem>>, %arg7: memref<8x1xf32, #tpu.memory_space<vmem>>, %arg8: memref<1x1x8x32xf32, #tpu.memory_space<vmem>>) attributes {dimension_semantics = [#tpu.dimension_semantics<parallel>, #tpu.dimension_semantics<parallel>, #tpu.dimension_semantics<arbitrary>], iteration_bounds = array<i64: 1, 2, 1>, scalar_prefetch = 0 : i64, scratch_operands = 0 : i64, tpu.core_type = #tpu.core_type<tc>, window_params = [{transform_indices = @transform_0, window_bounds = array<i64: 1, 32, 256>}, {pipeline_mode = #tpu.pipeline_mode<synchronous>, transform_indices = @transform_1, window_bounds = array<i64: 8, 32>}, {pipeline_mode = #tpu.pipeline_mode<synchronous>, transform_indices = @transform_2, window_bounds = array<i64: 8, 32>}, {pipeline_mode = #tpu.pipeline_mode<synchronous>, transform_indices = @transform_3, window_bounds = array<i64: 8, 1>}, {pipeline_mode = #tpu.pipeline_mode<synchronous>, transform_indices = @transform_4, window_bounds = array<i64: 8, 1>}, {transform_indices = @transform_5, window_bounds = array<i64: 1, 1, 8, 32>}]} {
    %c0_i32 = arith.constant 0 : i32
    %0 = arith.cmpi eq, %arg2, %c0_i32 : i32
    %1 = arith.extui %0 : i1 to i32
    %c0_i32_0 = arith.constant 0 : i32
    %2 = arith.cmpi ne, %1, %c0_i32_0 : i32
    scf.if %2 {
      %cst_25 = arith.constant 0.000000e+00 : f32
      %42 = vector.broadcast %cst_25 : f32 to vector<1x1x8x32xf32>
      %c0_26 = arith.constant 0 : index
      %c0_27 = arith.constant 0 : index
      %c0_28 = arith.constant 0 : index
      %c0_29 = arith.constant 0 : index
      %43 = vector.load %arg8[%c0_26, %c0_27, %c0_28, %c0_29] : memref<1x1x8x32xf32, #tpu.memory_space<vmem>>, vector<1x1x8x32xf32>
      tpu.vector_store %arg8[%c0_26, %c0_27, %c0_28, %c0_29], %42 {strides = array<i32>} : memref<1x1x8x32xf32, #tpu.memory_space<vmem>>, vector<1x1x8x32xf32>,
    } else {
    }
    %c0 = arith.constant 0 : index
    %c0_1 = arith.constant 0 : index
    %c0_2 = arith.constant 0 : index
    %3 = vector.load %arg3[%c0, %c0_1, %c0_2] : memref<1x32x256xf32, #tpu.memory_space<vmem>>, vector<1x32x256xf32>
    %4 = vector.shape_cast %3 : vector<1x32x256xf32> to vector<32x256xf32>
    %c0_3 = arith.constant 0 : index
    %c0_4 = arith.constant 0 : index
    %5 = vector.load %arg4[%c0_3, %c0_4] : memref<8x32xf32, #tpu.memory_space<vmem>>, vector<8x32xf32>
    %cst = arith.constant dense<0.000000e+00> : vector<8x256xf32>
    %6 = tpu.matmul %5, %4, %cst {dimension_numbers = #tpu.dot_dimension_numbers<[1], [0], [0], [1], [0, 0, 1, 1], [], []>} : vector<8x32xf32>, vector<32x256xf32>, vector<8x256xf32> -> vector<8x256xf32>
    %7 = arith.mulf %4, %4 : vector<32x256xf32>
    %cst_5 = arith.constant dense<0.000000e+00> : vector<256xf32>
    %8 = vector.multi_reduction <add>, %7, %cst_5 [0] : vector<32x256xf32> to vector<256xf32>
    %9 = vector.shape_cast %8 : vector<256xf32> to vector<1x256xf32>
    %c0_6 = arith.constant 0 : index
    %c0_7 = arith.constant 0 : index
    %10 = vector.load %arg6[%c0_6, %c0_7] : memref<8x1xf32, #tpu.memory_space<vmem>>, vector<8x1xf32>
    %11 = vector.broadcast %10 : vector<8x1xf32> to vector<8x256xf32>
    %12 = vector.broadcast %9 : vector<1x256xf32> to vector<8x256xf32>
    %13 = arith.mulf %11, %12 : vector<8x256xf32>
    %14 = arith.addf %6, %13 : vector<8x256xf32>
    %c0_8 = arith.constant 0 : index
    %c0_9 = arith.constant 0 : index
    %15 = vector.load %arg7[%c0_8, %c0_9] : memref<8x1xf32, #tpu.memory_space<vmem>>, vector<8x1xf32>
    %16 = vector.broadcast %15 : vector<8x1xf32> to vector<8x256xf32>
    %17 = arith.addf %14, %16 : vector<8x256xf32>
    %cst_10 = arith.constant dense<0xFF800000> : vector<256xf32>
    %18 = vector.multi_reduction <maximumf>, %17, %cst_10 [0] : vector<8x256xf32> to vector<256xf32>
    %19 = vector.shape_cast %18 : vector<256xf32> to vector<1x256xf32>
    %20 = vector.broadcast %19 : vector<1x256xf32> to vector<8x256xf32>
    %21 = arith.subf %17, %20 : vector<8x256xf32>
    %22 = math.exp %21 : vector<8x256xf32>
    %cst_11 = arith.constant dense<0.000000e+00> : vector<256xf32>
    %23 = vector.multi_reduction <add>, %22, %cst_11 [0] : vector<8x256xf32> to vector<256xf32>
    %24 = vector.shape_cast %23 : vector<256xf32> to vector<1x256xf32>
    %cst_12 = arith.constant 1.000000e+00 : f32
    %25 = vector.broadcast %cst_12 : f32 to vector<1x256xf32>
    %26 = arith.divf %25, %24 : vector<1x256xf32>
    %27 = vector.broadcast %26 : vector<1x256xf32> to vector<8x256xf32>
    %28 = arith.mulf %22, %27 : vector<8x256xf32>
    %cst_13 = arith.constant dense<0.000000e+00> : vector<8x32xf32>
    %29 = tpu.matmul %28, %4, %cst_13 {dimension_numbers = #tpu.dot_dimension_numbers<[1], [1], [0], [0], [0, 0, 1, 0], [], []>} : vector<8x256xf32>, vector<32x256xf32>, vector<8x32xf32> -> vector<8x32xf32>
    %cst_14 = arith.constant dense<0.000000e+00> : vector<8xf32>
    %30 = vector.multi_reduction <add>, %28, %cst_14 [1] : vector<8x256xf32> to vector<8xf32>
    %31 = vector.shape_cast %30 : vector<8xf32> to vector<8x1xf32>
    %c0_15 = arith.constant 0 : index
    %c0_16 = arith.constant 0 : index
    %c0_17 = arith.constant 0 : index
    %c0_18 = arith.constant 0 : index
    %32 = vector.load %arg8[%c0_15, %c0_16, %c0_17, %c0_18] : memref<1x1x8x32xf32, #tpu.memory_space<vmem>>, vector<1x1x8x32xf32>
    %33 = vector.shape_cast %32 : vector<1x1x8x32xf32> to vector<8x32xf32>
    %c0_19 = arith.constant 0 : index
    %c0_20 = arith.constant 0 : index
    %34 = vector.load %arg5[%c0_19, %c0_20] : memref<8x32xf32, #tpu.memory_space<vmem>>, vector<8x32xf32>
    %35 = vector.broadcast %31 : vector<8x1xf32> to vector<8x32xf32>
    %36 = arith.mulf %35, %34 : vector<8x32xf32>
    %37 = arith.subf %29, %36 : vector<8x32xf32>
    %38 = arith.addf %33, %37 : vector<8x32xf32>
    %c0_21 = arith.constant 0 : index
    %c0_22 = arith.constant 0 : index
    %c0_23 = arith.constant 0 : index
    %c0_24 = arith.constant 0 : index
    %39 = vector.load %arg8[%c0_21, %c0_22, %c0_23, %c0_24] : memref<1x1x8x32xf32, #tpu.memory_space<vmem>>, vector<1x1x8x32xf32>
    %40 = vector.shape_cast %39 : vector<1x1x8x32xf32> to vector<8x32xf32>
    %41 = vector.shape_cast %38 : vector<8x32xf32> to vector<1x1x8x32xf32>
    tpu.vector_store %arg8[%c0_21, %c0_22, %c0_23, %c0_24], %41 {strides = array<i32>} : memref<1x1x8x32xf32, #tpu.memory_space<vmem>>, vector<1x1x8x32xf32>,
    return
  }
  func.func @transform_0(%arg0: i32, %arg1: i32, %arg2: i32) -> (i32, i32, i32) {
    %c1_i32 = arith.constant 1 : i32
    %0 = arith.muli %arg0, %c1_i32 : i32
    %1 = arith.addi %0, %arg2 : i32
    %c0_i32 = arith.constant 0 : i32
    %c0_i32_0 = arith.constant 0 : i32
    return %arg1, %c0_i32, %1 : i32, i32, i32
  }
  func.func @transform_1(%arg0: i32, %arg1: i32, %arg2: i32) -> (i32, i32) {
    %c0_i32 = arith.constant 0 : i32
    %c0_i32_0 = arith.constant 0 : i32
    %c0_i32_1 = arith.constant 0 : i32
    return %c0_i32, %c0_i32_0 : i32, i32
  }
  func.func @transform_2(%arg0: i32, %arg1: i32, %arg2: i32) -> (i32, i32) {
    %c0_i32 = arith.constant 0 : i32
    %c0_i32_0 = arith.constant 0 : i32
    %c0_i32_1 = arith.constant 0 : i32
    return %c0_i32, %c0_i32_0 : i32, i32
  }
  func.func @transform_3(%arg0: i32, %arg1: i32, %arg2: i32) -> (i32, i32) {
    %c0_i32 = arith.constant 0 : i32
    %c0_i32_0 = arith.constant 0 : i32
    %c0_i32_1 = arith.constant 0 : i32
    return %c0_i32, %c0_i32_0 : i32, i32
  }
  func.func @transform_4(%arg0: i32, %arg1: i32, %arg2: i32) -> (i32, i32) {
    %c0_i32 = arith.constant 0 : i32
    %c0_i32_0 = arith.constant 0 : i32
    %c0_i32_1 = arith.constant 0 : i32
    return %c0_i32, %c0_i32_0 : i32, i32
  }
  func.func @transform_5(%arg0: i32, %arg1: i32, %arg2: i32) -> (i32, i32, i32, i32) {
    %c0_i32 = arith.constant 0 : i32
    %c0_i32_0 = arith.constant 0 : i32
    %c0_i32_1 = arith.constant 0 : i32
    return %arg0, %arg1, %c0_i32, %c0_i32_0 : i32, i32, i32, i32
  }
}

</mosaic_0001>

<llo_original>
// kernel: encoding_forward.1
$region0: #{encoding_forward.1}
  #allocation0 [shape = 'u32[]', space=smem, size = 0x4, offset = 0x4, fixed_abs, tag = 'smem constant byte address 0x4 - core index']
  #allocation1 [shape = 'u32[144,128]{1,0:T(1,128)}', space=vmem, size = 0x12000, scoped, tag = 'internal scratch']
  %s0 = inlined_call_operand.vmem [shape: f32[2,32,256], index: 0, kind: input, shape index: {}]
  %s1 = inlined_call_operand.vmem [shape: f32[8,32], index: 1, kind: input, shape index: {}]
  %s2 = inlined_call_operand.vmem [shape: f32[8,32], index: 2, kind: input, shape index: {}]
  %s3 = inlined_call_operand.vmem [shape: f32[8,1], index: 3, kind: input, shape index: {}]
  %s4 = inlined_call_operand.vmem [shape: f32[8,1], index: 4, kind: input, shape index: {}]
  %s5 = inlined_call_operand.hbm [shape: f32[1,2,8,32], index: 5, kind: output, shape index: {}]
  %s6 = sld [smem:[#allocation0]]
  $region57: #{encoding_forward.1} parent=0
    _
  %s8 = ssub.s32 1, %s6
  %s9 = scalar_select 0, %s8, %s6
  $region1: #{encoding_forward.1} parent=0
    #allocation2 [shape = 'u8[8192]{0}', space=vmem, size = 0x2000, scoped, tag = 'output window, operand 0']
    #allocation3 [shape = 's32[2]{0}', space=sflag, size = 0x8, scoped, tag = 'scoped memory for encoding_forward.1']
    %10 = vsyncpa [#allocation3], 0
    %s11 = scalar_lea.sflag [#allocation3], 1
    %12 = vsyncpa %s11, 0
    loop: start=0, step=1, limit=4
    $region2: #{encoding_forward.1} parent=1 // loop_pre_header
      _
    $region3: #{encoding_forward.1} parent=1 // loop_header
      %s14 = sphi 0, %s18
      %p15 = scmp.ge.s32.totalorder %s14, 4
      %s21 = sphi 0, %s40
      %s22 = sphi 0, %s36
      %s23 = sphi 0, %s32
      %s24 = sphi 0, %s21
      %s25 = sphi 0, %s22
      %s26 = sphi 0, %s23
      %s27 = sphi 0, %s24
      %s28 = sphi 0, %s25
      %s29 = sphi 0, %s26
      %s47 = sphi 0, %s49
      %s50 = sphi 0, %s47
      %s51 = sphi 0, %s50
      %s67 = sphi 0, %s51
      %s71 = sphi 0, %s71
      %s73 = sphi 0, %s71
      %s74 = sphi 0, %s73
      %s88 = sphi 0, %s74
      %s92 = sphi 0, %s92
      %s94 = sphi 0, %s92
      %s95 = sphi 0, %s94
      %s109 = sphi 0, %s95
      %s113 = sphi 0, %s113
      %s115 = sphi 0, %s113
      %s116 = sphi 0, %s115
      %s130 = sphi 0, %s116
      %s134 = sphi 0, %s134
      %s136 = sphi 0, %s134
      %s137 = sphi 0, %s136
      %s151 = sphi 0, %s137
      %s159 = sphi 0, %s161
      %s162 = sphi 0, %s159
      %s163 = sphi 0, %s162
      %s179 = sphi 0, %s163
    $region4: #{encoding_forward.1} parent=1 // loop_header_branch
      %17 = sbr.rel (%p15) target = $region8
    $region5: #{encoding_forward.1} parent=1 // loop_body
      %s19 = ssub.s32 %s14, 1
      %s20 = ssub.s32 %s14, 2
      %s30 = sadd.s32 1, %s23
      %p31 = scmp.ge.s32.totalorder %s30, 1
      %s32 = scalar_select %p31, 0, %s30
      %s33 = sadd.s32 1, %s22
      %s34 = scalar_select %p31, %s33, %s22
      %p35 = scmp.ge.s32.totalorder %s34, 2
      %s36 = scalar_select %p35, 0, %s34
      %s37 = sadd.s32 1, %s21
      %s38 = scalar_select %p35, %s37, %s21
      %p39 = scmp.ge.s32.totalorder %s38, 1
      %s40 = scalar_select %p39, 0, %s38
      %s41 = sadd.s32 %s21, %s23
      %s42 = sadd.s32 %s40, %s32
      %s43 = ssub.s32 %s22, %s36
      %s44 = ssub.s32 %s41, %s42
      %s45 = sor.u32 %s43, %s44
      %p46 = scmp.eq.s32.totalorder %s45, 0
      %s48 = sadd.s32 %s47, 1
      %s49 = scalar_select %p46, %s47, %s48
      %p52 = pneg %p46
      %p53 = scmp.eq.s32.totalorder %s14, 1
      %p54 = por %p52, %p53
      %p55 = scmp.ne.s32.totalorder %s47, %s50
      %p56 = scmp.eq.s32.totalorder %s14, 0
      %p57 = por %p55, %p56
      %p58 = scmp.ne.s32.totalorder %s47, %s50
      %p59 = scmp.eq.s32.totalorder %s19, 1
      %p60 = por %p58, %p59
      %p61 = scmp.ne.s32.totalorder %s50, %s51
      %p62 = scmp.eq.s32.totalorder %s19, 0
      %p63 = por %p61, %p62
      %p64 = scmp.ne.s32.totalorder %s50, %s51
      %p65 = scmp.eq.s32.totalorder %s20, 1
      %p66 = por %p64, %p65
      %p68 = scmp.ne.s32.totalorder %s51, %s67
      %p69 = scmp.eq.s32.totalorder %s20, 0
      %p70 = por %p68, %p69
      %s72 = sadd.s32 %s71, 1
      %p75 = scmp.eq.s32.totalorder %s14, 1
      %p76 = scmp.ne.s32.totalorder %s71, %s73
      %p77 = scmp.eq.s32.totalorder %s14, 0
      %p78 = por %p76, %p77
      %p79 = scmp.ne.s32.totalorder %s71, %s73
      %p80 = scmp.eq.s32.totalorder %s19, 1
      %p81 = por %p79, %p80
      %p82 = scmp.ne.s32.totalorder %s73, %s74
      %p83 = scmp.eq.s32.totalorder %s19, 0
      %p84 = por %p82, %p83
      %p85 = scmp.ne.s32.totalorder %s73, %s74
      %p86 = scmp.eq.s32.totalorder %s20, 1
      %p87 = por %p85, %p86
      %p89 = scmp.ne.s32.totalorder %s74, %s88
      %p90 = scmp.eq.s32.totalorder %s20, 0
      %p91 = por %p89, %p90
      %s93 = sadd.s32 %s92, 1
      %p96 = scmp.eq.s32.totalorder %s14, 1
      %p97 = scmp.ne.s32.totalorder %s92, %s94
      %p98 = scmp.eq.s32.totalorder %s14, 0
      %p99 = por %p97, %p98
      %p100 = scmp.ne.s32.totalorder %s92, %s94
      %p101 = scmp.eq.s32.totalorder %s19, 1
      %p102 = por %p100, %p101
      %p103 = scmp.ne.s32.totalorder %s94, %s95
      %p104 = scmp.eq.s32.totalorder %s19, 0
      %p105 = por %p103, %p104
      %p106 = scmp.ne.s32.totalorder %s94, %s95
      %p107 = scmp.eq.s32.totalorder %s20, 1
      %p108 = por %p106, %p107
      %p110 = scmp.ne.s32.totalorder %s95, %s109
      %p111 = scmp.eq.s32.totalorder %s20, 0
      %p112 = por %p110, %p111
      %s114 = sadd.s32 %s113, 1
      %p117 = scmp.eq.s32.totalorder %s14, 1
      %p118 = scmp.ne.s32.totalorder %s113, %s115
      %p119 = scmp.eq.s32.totalorder %s14, 0
      %p120 = por %p118, %p119
      %p121 = scmp.ne.s32.totalorder %s113, %s115
      %p122 = scmp.eq.s32.totalorder %s19, 1
      %p123 = por %p121, %p122
      %p124 = scmp.ne.s32.totalorder %s115, %s116
      %p125 = scmp.eq.s32.totalorder %s19, 0
      %p126 = por %p124, %p125
      %p127 = scmp.ne.s32.totalorder %s115, %s116
      %p128 = scmp.eq.s32.totalorder %s20, 1
      %p129 = por %p127, %p128
      %p131 = scmp.ne.s32.totalorder %s116, %s130
      %p132 = scmp.eq.s32.totalorder %s20, 0
      %p133 = por %p131, %p132
      %s135 = sadd.s32 %s134, 1
      %p138 = scmp.eq.s32.totalorder %s14, 1
      %p139 = scmp.ne.s32.totalorder %s134, %s136
      %p140 = scmp.eq.s32.totalorder %s14, 0
      %p141 = por %p139, %p140
      %p142 = scmp.ne.s32.totalorder %s134, %s136
      %p143 = scmp.eq.s32.totalorder %s19, 1
      %p144 = por %p142, %p143
      %p145 = scmp.ne.s32.totalorder %s136, %s137
      %p146 = scmp.eq.s32.totalorder %s19, 0
      %p147 = por %p145, %p146
      %p148 = scmp.ne.s32.totalorder %s136, %s137
      %p149 = scmp.eq.s32.totalorder %s20, 1
      %p150 = por %p148, %p149
      %p152 = scmp.ne.s32.totalorder %s137, %s151
      %p153 = scmp.eq.s32.totalorder %s20, 0
      %p154 = por %p152, %p153
      %s155 = ssub.s32 %s21, %s40
      %s156 = ssub.s32 %s22, %s36
      %s157 = sor.u32 %s155, %s156
      %p158 = scmp.eq.s32.totalorder %s157, 0
      %s160 = sadd.s32 %s159, 1
      %s161 = scalar_select %p158, %s159, %s160
      %p164 = pneg %p158
      %p165 = scmp.eq.s32.totalorder %s14, 1
      %p166 = por %p164, %p165
      %p167 = scmp.ne.s32.totalorder %s159, %s162
      %p168 = scmp.eq.s32.totalorder %s14, 0
      %p169 = por %p167, %p168
      %p170 = scmp.ne.s32.totalorder %s159, %s162
      %p171 = scmp.eq.s32.totalorder %s19, 1
      %p172 = por %p170, %p171
      %p173 = scmp.ne.s32.totalorder %s162, %s163
      %p174 = scmp.eq.s32.totalorder %s19, 0
      %p175 = por %p173, %p174
      %p176 = scmp.ne.s32.totalorder %s162, %s163
      %p177 = scmp.eq.s32.totalorder %s20, 1
      %p178 = por %p176, %p177
      %p180 = scmp.ne.s32.totalorder %s163, %s179
      %p181 = scmp.eq.s32.totalorder %s20, 0
      %p182 = por %p180, %p181
      %p183 = scmp.le.s32.totalorder 1, %s14
      %p184 = scmp.lt.s32.totalorder %s14, 3
      %p185 = pnand %p183, %p184
      %p186 = pneg %p185
      // Predicated region
      $region9: #{encoding_forward.1} parent=5 // pred_check
        _
      $region10: #{encoding_forward.1} parent=5 // pred_check_branch
        %188 = sbr.rel (%p185) target = $region12
      $region11: #{encoding_forward.1} parent=5 // pred_region
        %s189 = ssub.s32 %s14, 1
        // Predicated region
        $region13: #{encoding_forward.1} parent=11 // pred_check
          %p190 = pneg %p84
        $region14: #{encoding_forward.1} parent=11 // pred_check_branch
          %192 = sbr.rel (%p190) target = $region16
        $region15: #{encoding_forward.1} parent=11 // pred_region
          _
        $region16: #{encoding_forward.1} parent=11 // pred_fallthru
          _
        // Predicated region
        $region17: #{encoding_forward.1} parent=11 // pred_check
          %p193 = pneg %p105
        $region18: #{encoding_forward.1} parent=11 // pred_check_branch
          %195 = sbr.rel (%p193) target = $region20
        $region19: #{encoding_forward.1} parent=11 // pred_region
          _
        $region20: #{encoding_forward.1} parent=11 // pred_fallthru
          _
        // Predicated region
        $region21: #{encoding_forward.1} parent=11 // pred_check
          %p196 = pneg %p126
        $region22: #{encoding_forward.1} parent=11 // pred_check_branch
          %198 = sbr.rel (%p196) target = $region24
        $region23: #{encoding_forward.1} parent=11 // pred_region
          _
        $region24: #{encoding_forward.1} parent=11 // pred_fallthru
          _
        // Predicated region
        $region25: #{encoding_forward.1} parent=11 // pred_check
          %p199 = pneg %p147
        $region26: #{encoding_forward.1} parent=11 // pred_check_branch
          %201 = sbr.rel (%p199) target = $region28
        $region27: #{encoding_forward.1} parent=11 // pred_region
          _
        $region28: #{encoding_forward.1} parent=11 // pred_fallthru
          _
      $region12: #{encoding_forward.1} parent=5 // pred_fallthru
        _
      %p202 = scmp.lt.s32.totalorder %s14, 2
      // Predicated region
      $region29: #{encoding_forward.1} parent=5 // pred_check
        %p203 = pneg %p202
      $region30: #{encoding_forward.1} parent=5 // pred_check_branch
        %205 = sbr.rel (%p203) target = $region32
      $region31: #{encoding_forward.1} parent=5 // pred_region
        // Predicated region
        $region33: #{encoding_forward.1} parent=31 // pred_check
          %p206 = pneg %p57
        $region34: #{encoding_forward.1} parent=31 // pred_check_branch
          %208 = sbr.rel (%p206) target = $region36
        $region35: #{encoding_forward.1} parent=31 // pred_region
          %s209 = sadd.s32 %s21, %s23
          %s210 = smul.u32 2, %s209
          %p211 = scmp.lt.s32.totalorder %s22, 1
          %s212 = scalar_select %p211, %s22, 1
          %p213 = scmp.lt.s32.totalorder %s210, 1
          %s214 = scalar_select %p213, %s210, 1
          %s215 = smul.addr %s212, 8
          %s216 = sadd.s32 %s214, %s215
          %s217 = smul.addr %s216, 8
          %s218 = scalar_lea.vmem %s0, %s217
          %s219 = sadd.s32 %s21, %s23
          %s220 = smul.u32 2, %s219
        $region36: #{encoding_forward.1} parent=31 // pred_fallthru
          _
      $region32: #{encoding_forward.1} parent=5 // pred_fallthru
        _
      %p221 = scmp.le.s32.totalorder 1, %s14
      %p222 = scmp.lt.s32.totalorder %s14, 3
      %p223 = pnand %p221, %p222
      %p224 = pneg %p223
      // Predicated region
      $region37: #{encoding_forward.1} parent=5 // pred_check
        _
      $region38: #{encoding_forward.1} parent=5 // pred_check_branch
        %226 = sbr.rel (%p223) target = $region40
      $region39: #{encoding_forward.1} parent=5 // pred_region
        %s227 = ssub.s32 %s14, 1
        %s228 = sadd.s32 %s24, %s26
        %s229 = smul.u32 2, %s228
        %p230 = scmp.lt.s32.totalorder %s25, 1
        %s231 = scalar_select %p230, %s25, 1
        %p232 = scmp.lt.s32.totalorder %s229, 1
        %s233 = scalar_select %p232, %s229, 1
        %s234 = smul.addr %s231, 8
        %s235 = sadd.s32 %s233, %s234
        %s236 = smul.addr %s235, 8
        %s237 = scalar_lea.vmem %s0, %s236
        %p238 = pneg %p63
        %p239 = pneg %p60
        %p240 = pneg %p84
        %p241 = pneg %p81
        %p242 = pneg %p105
        %p243 = pneg %p102
        %p244 = pneg %p126
        %p245 = pneg %p123
        %p246 = pneg %p147
        %p247 = pneg %p144
        %p248 = pneg %p175
        %p249 = pneg %p172
        %s250 = sand.u32 %s162, 1
        %s251 = scalar_lea.sflag [#allocation3], %s250
        %s252 = sand.u32 %s162, 1
        %s253 = smul.addr %s252, 8
        %s254 = scalar_lea.vmem [#allocation2], %s253
        %s255 = sadd.s32 %s24, %s26
        %s256 = smul.u32 2, %s255
        %p257 = scmp.lt.s32.totalorder %s25, 1
        %s258 = scalar_select %p257, %s25, 1
        %p259 = scmp.lt.s32.totalorder %s256, 1
        %s260 = scalar_select %p259, %s256, 1
        %s261 = smul.addr %s258, 8
        %s262 = sadd.s32 %s260, %s261
        %s263 = smul.addr %s262, 8
        %s264 = scalar_lea.vmem %s0, %s263
        %s265 = sadd.s32 %s24, %s26
        %s266 = smul.u32 2, %s265
        %p267 = scmp.eq.s32.totalorder %s26, 0
        // Predicated region
        $region41: #{encoding_forward.1} parent=39 // pred_check
          %p268 = pneg %p267
        $region42: #{encoding_forward.1} parent=39 // pred_check_branch
          %270 = sbr.rel (%p268) target = $region44
        $region43: #{encoding_forward.1} parent=39 // pred_region
          %vm271 = vcmask 261120
          %272 = vst.msk [vmem:[%s254] sm:$0xff] %vm271, 0.0
        $region44: #{encoding_forward.1} parent=39 // pred_fallthru
          _
        %v273 = vld [vmem:[%s264] sm:$0xff]
        %v274 = vld [vmem:[%s264 + $0x8] sm:$0xff]
        %v275 = vld [vmem:[%s264 + $0x10] sm:$0xff]
        %v276 = vld [vmem:[%s264 + $0x18] sm:$0xff]
        %v277 = vld [vmem:[%s264 + $0x20] sm:$0xff]
        %v278 = vld [vmem:[%s264 + $0x28] sm:$0xff]
        %v279 = vld [vmem:[%s264 + $0x30] sm:$0xff]
        %v280 = vld [vmem:[%s264 + $0x38] sm:$0xff]
        %v281 = vld [vmem:[%s1] sm:$0xff]
        %v282 = vmul.f32 %v273, %v273
        %v283 = vmul.f32 %v274, %v274
        %v284 = vmul.f32 %v275, %v275
        %v285 = vmul.f32 %v276, %v276
        %v286 = vmul.f32 %v277, %v277
        %v287 = vmul.f32 %v278, %v278
        %v288 = vmul.f32 %v279, %v279
        %v289 = vmul.f32 %v280, %v280
        %v290 = vadd.f32 %v282, %v284
        %v291 = vadd.f32 %v290, %v286
        %v292 = vadd.f32 %v291, %v288
        %v293 = vrot.slane %v292, 4
        %v294 = vadd.f32 %v292, %v293
        %v295 = vrot.slane %v294, 2
        %v296 = vadd.f32 %v294, %v295
        %v297 = vrot.slane %v296, 1
        %v298 = vadd.f32 %v296, %v297
        %v299 = vadd.f32 %v283, %v285
        %v300 = vadd.f32 %v299, %v287
        %v301 = vadd.f32 %v300, %v289
        %v302 = vrot.slane %v301, 4
        %v303 = vadd.f32 %v301, %v302
        %v304 = vrot.slane %v303, 2
        %v305 = vadd.f32 %v303, %v304
        %v306 = vrot.slane %v305, 1
        %v307 = vadd.f32 %v305, %v306
        %v308 = vld [vmem:[%s3] sm:$0xff]
        %310 = vset.pattern.permute.xlu0 0
        %311 = vperm.xlu0 %310, %v308
        %v312 = vpop.permute.xlu0 %311
        %v314 = vmul.f32 %v312, %v298
        %v315 = vmul.f32 %v312, %v307
        %vm316 = vcmask 261120
        %v318 = vsel %vm316, %v281, 0
        %320 = vmatprep.subr.mxu0 0.0
        %321 = vmatpush1.msra.mxu0 0.0
        %322 = vmatprep.subr.mxu0 0.0
        %323 = vmatpush1.msra.mxu0 0.0
        %324 = vmatprep.subr.mxu0 0.0
        %325 = vmatpush1.msra.mxu0 0.0
        %326 = vmatprep.subr.mxu0 0.0
        %327 = vmatpush1.msra.mxu0 0.0
        %328 = vmatprep.subr.mxu0 0.0
        %329 = vmatpush1.msra.mxu0 0.0
        %330 = vmatprep.subr.mxu0 0.0
        %331 = vmatpush1.msra.mxu0 0.0
        %332 = vmatprep.subr.mxu0 0.0
        %333 = vmatpush1.msra.mxu0 0.0
        %334 = vmatprep.subr.mxu0 0.0
        %335 = vmatpush1.msra.mxu0 0.0
        %336 = vmatprep.subr.mxu0 0.0
        %337 = vmatpush1.msra.mxu0 0.0
        %338 = vmatprep.subr.mxu0 0.0
        %339 = vmatpush1.msra.mxu0 0.0
        %340 = vmatprep.subr.mxu0 0.0
        %341 = vmatpush1.msra.mxu0 0.0
        %342 = vmatprep.subr.mxu0 0.0
        %343 = vmatpush1.msra.mxu0 0.0
        %344 = vmatprep.subr.mxu0 %v280
        %345 = vmatpush1.msra.mxu0 %v279
        %346 = vmatprep.subr.mxu0 %v278
        %347 = vmatpush1.msra.mxu0 %v277
        %348 = vmatprep.subr.mxu0 %v276
        %349 = vmatpush1.msra.mxu0 %v275
        %350 = vmatprep.subr.mxu0 %v274
        %351 = vmatpush1.msra.mxu0 %v273
        %352 = vmatprep.subr.mxu0 0.0
        %353 = vmatpush2.msra.mxu0 0.0
        %354 = vmatprep.subr.mxu0 0.0
        %355 = vmatpush2.msra.mxu0 0.0
        %356 = vmatprep.subr.mxu0 0.0
        %357 = vmatpush2.msra.mxu0 0.0
        %358 = vmatprep.subr.mxu0 0.0
        %359 = vmatpush2.msra.mxu0 0.0
        %360 = vmatprep.subr.mxu0 0.0
        %361 = vmatpush2.msra.mxu0 0.0
        %362 = vmatprep.subr.mxu0 0.0
        %363 = vmatpush2.msra.mxu0 0.0
        %364 = vmatprep.subr.mxu0 0.0
        %365 = vmatpush2.msra.mxu0 0.0
        %366 = vmatprep.subr.mxu0 0.0
        %367 = vmatpush2.msra.mxu0 0.0
        %368 = vmatprep.subr.mxu0 0.0
        %369 = vmatpush2.msra.mxu0 0.0
        %370 = vmatprep.subr.mxu0 0.0
        %371 = vmatpush2.msra.mxu0 0.0
        %372 = vmatprep.subr.mxu0 0.0
        %373 = vmatpush2.msra.mxu0 0.0
        %374 = vmatprep.subr.mxu0 0.0
        %375 = vmatpush2.msra.mxu0 0.0
        %376 = vmatprep.subr.mxu0 0.0
        %377 = vmatpush2.msra.mxu0 0.0
        %378 = vmatprep.subr.mxu0 0.0
        %379 = vmatpush2.msra.mxu0 0.0
        %380 = vmatprep.subr.mxu0 0.0
        %381 = vmatpush2.msra.mxu0 0.0
        %382 = vmatprep.subr.mxu0 0.0
        %383 = vmatpush2.msra.mxu0 0.0
        %384 = vmatprep.mubr.f32.mxu0 0.0
        %385 = vmatmul.mubr.f32.gmra.mxu0 %v318
        %v386 = vpop.f32.mrf.mxu0
        %v387 = vadd.f32 %v314, %v386
        %v388 = vpop.f32.mrf.mxu0
        %v389 = vadd.f32 %v315, %v388
        %390 = vdwg.mxu0
        %v391 = vld [vmem:[%s4] sm:$0xff]
        %393 = vset.pattern.permute.xlu0 0
        %394 = vperm.xlu0 %393, %v391
        %v395 = vpop.permute.xlu0 %394
        %v397 = vadd.f32 %v387, %v395
        %v398 = vadd.f32 %v389, %v395
        %v399 = vrot.slane %v397, 4
        %v400 = vmax.f32 %v397, %v399
        %v401 = vrot.slane %v400, 2
        %v402 = vmax.f32 %v400, %v401
        %v403 = vrot.slane %v402, 1
        %v404 = vmax.f32 %v402, %v403
        %v405 = vrot.slane %v398, 4
        %v406 = vmax.f32 %v398, %v405
        %v407 = vrot.slane %v406, 2
        %v408 = vmax.f32 %v406, %v407
        %v409 = vrot.slane %v408, 1
        %v410 = vmax.f32 %v408, %v409
        %v411 = vsub.f32 %v397, %v404
        %v412 = vsub.f32 %v398, %v410
        %v413 = vmul.f32 %v411, 1.442695
        %v414 = vpow.pop %v413
        %v415 = vmul.f32 %v412, 1.442695
        %v416 = vpow.pop %v415
        %v417 = vrot.slane %v414, 4
        %v418 = vadd.f32 %v414, %v417
        %v419 = vrot.slane %v418, 2
        %v420 = vadd.f32 %v418, %v419
        %v421 = vrot.slane %v420, 1
        %v422 = vadd.f32 %v420, %v421
        %v423 = vrot.slane %v416, 4
        %v424 = vadd.f32 %v416, %v423
        %v425 = vrot.slane %v424, 2
        %v426 = vadd.f32 %v424, %v425
        %v427 = vrot.slane %v426, 1
        %v428 = vadd.f32 %v426, %v427
        %v429 = vrcp.pop %v422
        %v430 = vmul.f32 1.0, %v429
        %v431 = vrcp.pop %v428
        %v432 = vmul.f32 1.0, %v431
        %v433 = vmul.f32 %v414, %v430
        %v434 = vmul.f32 %v416, %v432
        %435 = vmatprep.subr.mxu0 0.0
        %436 = vmatpush1.xpose.msra.mxu0 0.0
        %437 = vmatprep.subr.mxu0 0.0
        %438 = vmatpush1.xpose.msra.mxu0 0.0
        %439 = vmatprep.subr.mxu0 0.0
        %440 = vmatpush1.xpose.msra.mxu0 0.0
        %441 = vmatprep.subr.mxu0 0.0
        %442 = vmatpush1.xpose.msra.mxu0 0.0
        %443 = vmatprep.subr.mxu0 0.0
        %444 = vmatpush1.xpose.msra.mxu0 0.0
        %445 = vmatprep.subr.mxu0 0.0
        %446 = vmatpush1.xpose.msra.mxu0 0.0
        %447 = vmatprep.subr.mxu0 0.0
        %448 = vmatpush1.xpose.msra.mxu0 0.0
        %449 = vmatprep.subr.mxu0 0.0
        %450 = vmatpush1.xpose.msra.mxu0 0.0
        %451 = vmatprep.subr.mxu0 0.0
        %452 = vmatpush1.xpose.msra.mxu0 0.0
        %453 = vmatprep.subr.mxu0 0.0
        %454 = vmatpush1.xpose.msra.mxu0 0.0
        %455 = vmatprep.subr.mxu0 0.0
        %456 = vmatpush1.xpose.msra.mxu0 0.0
        %457 = vmatprep.subr.mxu0 0.0
        %458 = vmatpush1.xpose.msra.mxu0 0.0
        %459 = vmatprep.subr.mxu0 %v280
        %460 = vmatpush1.xpose.msra.mxu0 %v279
        %461 = vmatprep.subr.mxu0 %v278
        %462 = vmatpush1.xpose.msra.mxu0 %v277
        %463 = vmatprep.subr.mxu0 %v276
        %464 = vmatpush1.xpose.msra.mxu0 %v275
        %465 = vmatprep.subr.mxu0 %v274
        %466 = vmatpush1.xpose.msra.mxu0 %v273
        %467 = vmatprep.subr.mxu0 0.0
        %468 = vmatpush2.xpose.msra.mxu0 0.0
        %469 = vmatprep.subr.mxu0 0.0
        %470 = vmatpush2.xpose.msra.mxu0 0.0
        %471 = vmatprep.subr.mxu0 0.0
        %472 = vmatpush2.xpose.msra.mxu0 0.0
        %473 = vmatprep.subr.mxu0 0.0
        %474 = vmatpush2.xpose.msra.mxu0 0.0
        %475 = vmatprep.subr.mxu0 0.0
        %476 = vmatpush2.xpose.msra.mxu0 0.0
        %477 = vmatprep.subr.mxu0 0.0
        %478 = vmatpush2.xpose.msra.mxu0 0.0
        %479 = vmatprep.subr.mxu0 0.0
        %480 = vmatpush2.xpose.msra.mxu0 0.0
        %481 = vmatprep.subr.mxu0 0.0
        %482 = vmatpush2.xpose.msra.mxu0 0.0
        %483 = vmatprep.subr.mxu0 0.0
        %484 = vmatpush2.xpose.msra.mxu0 0.0
        %485 = vmatprep.subr.mxu0 0.0
        %486 = vmatpush2.xpose.msra.mxu0 0.0
        %487 = vmatprep.subr.mxu0 0.0
        %488 = vmatpush2.xpose.msra.mxu0 0.0
        %489 = vmatprep.subr.mxu0 0.0
        %490 = vmatpush2.xpose.msra.mxu0 0.0
        %491 = vmatprep.subr.mxu0 0.0
        %492 = vmatpush2.xpose.msra.mxu0 0.0
        %493 = vmatprep.subr.mxu0 0.0
        %494 = vmatpush2.xpose.msra.mxu0 0.0
        %495 = vmatprep.subr.mxu0 0.0
        %496 = vmatpush2.xpose.msra.mxu0 0.0
        %497 = vmatprep.subr.mxu0 0.0
        %498 = vmatpush2.xpose.msra.mxu0 0.0
        %499 = vmatprep.mubr.f32.mxu0 %v434
        %500 = vmatmul.mubr.f32.gmra.mxu0 %v433
        %v501 = vpop.f32.mrf.mxu0
        %v502 = vadd.f32 0.0, %v501
        %v503 = vpop.f32.mrf.mxu0
        %504 = vdwg.mxu0
        %v505 = vadd.f32 %v433, %v434
        %506 = vadd.xlane.f32.xlu0 %v505
        %v507 = vpop.xlane.xlu0 %506
        %v508 = vld [vmem:[%s254] sm:$0xff]
        %v509 = vld [vmem:[%s2] sm:$0xff]
        %v510 = vmul.f32 %v507, %v509
        %v511 = vsub.f32 %v502, %v510
        %v512 = vadd.f32 %v508, %v511
        %513 = vst.msk [vmem:[%s254] sm:$0xff] %vm316, %v512
        %s514 = sand.u32 %s162, 1
        %s515 = scalar_lea.sflag [#allocation3], %s514
        %s516 = sand.u32 %s162, 1
        %s517 = smul.addr %s516, 8
        %s518 = scalar_lea.vmem [#allocation2], %s517
        // Predicated region
        $region45: #{encoding_forward.1} parent=39 // pred_check
          %p519 = pneg %p172
        $region46: #{encoding_forward.1} parent=39 // pred_check_branch
          %521 = sbr.rel (%p519) target = $region48
        $region47: #{encoding_forward.1} parent=39 // pred_region
          %s523 = ssub.s32 128, 128
          %524 = vsyncadd %s515, %s523
          %s525 = smul.addr %s24, 2
          %s526 = sadd.s32 %s25, %s525
          %s527 = smul.addr %s526, 128
          %s528 = scalar_lea.hbm %s5, %s527
          %s530 = sshll.u32 %s518, 4
          %s531 = int_to_ptr.vmem [resolvable:$true] %s530
          %533 = dma.vmem_to_hbm [thread:$0]  %s531, 128, %s528, %s515
        $region48: #{encoding_forward.1} parent=39 // pred_fallthru
          _
      $region40: #{encoding_forward.1} parent=5 // pred_fallthru
        _
      %p534 = scmp.le.s32.totalorder 2, %s14
      // Predicated region
      $region49: #{encoding_forward.1} parent=5 // pred_check
        %p535 = pneg %p534
      $region50: #{encoding_forward.1} parent=5 // pred_check_branch
        %537 = sbr.rel (%p535) target = $region52
      $region51: #{encoding_forward.1} parent=5 // pred_region
        %s538 = ssub.s32 %s14, 2
        // Predicated region
        $region53: #{encoding_forward.1} parent=51 // pred_check
          %p539 = pneg %p178
        $region54: #{encoding_forward.1} parent=51 // pred_check_branch
          %541 = sbr.rel (%p539) target = $region56
        $region55: #{encoding_forward.1} parent=51 // pred_region
          %s542 = sand.u32 %s163, 1
          %s543 = scalar_lea.sflag [#allocation3], %s542
          %s544 = sand.u32 %s163, 1
          %s545 = smul.addr %s544, 8
          %s546 = scalar_lea.vmem [#allocation2], %s545
          %547 = dma.done %s543, 128
        $region56: #{encoding_forward.1} parent=51 // pred_fallthru
          _
      $region52: #{encoding_forward.1} parent=5 // pred_fallthru
        _
    $region6: #{encoding_forward.1} parent=1 // loop_footer
      %s18 = sadd.s32 1, %s14
    $region7: #{encoding_forward.1} parent=1 // loop_footer_branch
      %13 = sbr.rel target = $region3
    $region8: #{encoding_forward.1} parent=1 // loop_exit
      _
    %548 = vsyncpa [#allocation3], 1
    %s549 = scalar_lea.sflag [#allocation3], 1
    %550 = vsyncpa %s549, 1

</llo_original>
